<compile_context>
chip_gen: v7x
topology: tpu7x:2x2x1
jax: 0.10.0
libtpu: 0.0.40
codegen_flags: <defaults>
</compile_context>

<pallas_src>
import math
import jax
import jax.numpy as jnp
from jax.experimental import pallas as pl
from jax.experimental.pallas import tpu as pltpu

# ---------------------------------------------------------------------------
# static sizes implied by the module (frame (3,16,16), gt (5,))
# ---------------------------------------------------------------------------
C_IN, C_OUT, K = 3, 8, 3
H = W = 16
STRIDE, PAD = 2, 1
HO = (H + 2 * PAD - K) // STRIDE + 1          # 8
WO = (W + 2 * PAD - K) // STRIDE + 1          # 8
P = HO * WO                                   # 64  conv output positions
CKK = C_IN * K * K                            # 27  im2col depth
FEAT = 27                                     # cnn feature size
D_MODEL = FEAT + 5                            # 32  transformer width
FFN = 64
OUT = 5
OUT_PAD = 128                                 # lane-dense padded head output


def _full_spec(shape):
    n = len(shape)
    return pl.BlockSpec(shape, lambda i, _n=n: (0,) * _n)


# ---------------------------------------------------------------------------
# the single fused kernel: CNN -> concat(gt) -> transformer -> head
# ---------------------------------------------------------------------------
def _makenet_kernel(patches_ref, gt_ref, convwb_ref, fcwb_ref, qkvwb_ref,
                    owb_ref, ln_ref, ffn1_ref, ffn2_ref, headwb_ref,
                    out_ref, x_ref):
    f32 = jnp.float32

    # ---- CNN: im2col matmul + bias + ReLU + global average pool + FC ----
    conv = jnp.dot(patches_ref[...], convwb_ref[:CKK, :],
                   preferred_element_type=f32) + convwb_ref[CKK:CKK + 1, :]
    conv = jnp.maximum(conv, 0.0)                               # (P, Cout)
    pooled = jnp.mean(conv, axis=0, keepdims=True)              # (1, Cout)
    feat = jnp.dot(pooled, fcwb_ref[:C_OUT, :],
                   preferred_element_type=f32) + fcwb_ref[C_OUT:C_OUT + 1, :]

    # ---- build transformer token: [cnn feature | gt] ----
    x = jnp.concatenate([feat, gt_ref[...]], axis=-1)           # (1, D)
    seq, d = x.shape

    # ---- self-attention with packed QKV; S == 1 => softmax is identically 1
    qkv = jnp.dot(x, qkvwb_ref[:D_MODEL, :],
                  preferred_element_type=f32) + qkvwb_ref[D_MODEL:D_MODEL + 1, :]
    v = qkv[:, 2 * D_MODEL:3 * D_MODEL]
    if seq == 1:                                                # static branch
        attn = v
    else:
        q = qkv[:, :D_MODEL] * (1.0 / math.sqrt(d))             # scale hoisted
        k = qkv[:, D_MODEL:2 * D_MODEL]
        s = jnp.dot(q, k.T, preferred_element_type=f32)
        s = s - jnp.max(s, axis=-1, keepdims=True)
        p = jnp.exp(s)
        p = p * pl.reciprocal(jnp.sum(p, axis=-1, keepdims=True), approx=True)
        attn = jnp.dot(p, v, preferred_element_type=f32)
    attn = jnp.dot(attn, owb_ref[:D_MODEL, :],
                   preferred_element_type=f32) + owb_ref[D_MODEL:D_MODEL + 1, :]

    # ---- residual + LayerNorm 1 ----
    h = x + attn
    mu = jnp.mean(h, axis=-1, keepdims=True)
    var = jnp.mean((h - mu) ** 2, axis=-1, keepdims=True)
    h = (h - mu) * jax.lax.rsqrt(var + 1e-5) * ln_ref[0:1, :] + ln_ref[1:2, :]

    # ---- FFN (ReLU) ----
    f = jnp.dot(h, ffn1_ref[:D_MODEL, :],
                preferred_element_type=f32) + ffn1_ref[D_MODEL:D_MODEL + 1, :]
    f = jnp.maximum(f, 0.0)
    f = jnp.dot(f, ffn2_ref[:FFN, :],
                preferred_element_type=f32) + ffn2_ref[FFN:FFN + 1, :]

    # ---- residual + LayerNorm 2 ----
    h2 = h + f
    mu2 = jnp.mean(h2, axis=-1, keepdims=True)
    var2 = jnp.mean((h2 - mu2) ** 2, axis=-1, keepdims=True)
    h2 = (h2 - mu2) * jax.lax.rsqrt(var2 + 1e-5) * ln_ref[2:3, :] + ln_ref[3:4, :]

    # ---- 5-way head, lane-padded to 128 (cols >=5 are zero weights) ----
    out_ref[...] = jnp.dot(h2, headwb_ref[:D_MODEL, :],
                           preferred_element_type=f32) + headwb_ref[D_MODEL:D_MODEL + 1, :]
    x_ref[...] = x                                              # (1, 32) token


# ---------------------------------------------------------------------------
# jitted step: im2col (tiny XLA prologue) + single pallas_call
# ---------------------------------------------------------------------------
def _im2col(frame):
    xpad = jnp.pad(frame, ((0, 0), (PAD, PAD), (PAD, PAD)))     # (3, 18, 18)
    cols = [xpad[:, kh:kh + STRIDE * HO:STRIDE, kw:kw + STRIDE * WO:STRIDE]
            for kh in range(K) for kw in range(K)]              # 9 x (C, HO, WO)
    # -> patches[p, c*9 + kh*3 + kw] matching PyTorch (Cout, C, kh, kw) weights
    return jnp.stack(cols, axis=0).transpose(2, 3, 1, 0).reshape(P, CKK)


def _fused_step_impl(frame, gts_row, pk):
    patches = _im2col(frame)
    out_pad, x_row = pl.pallas_call(
        _makenet_kernel,
        out_shape=(jax.ShapeDtypeStruct((1, OUT_PAD), jnp.float32),
                   jax.ShapeDtypeStruct((1, D_MODEL), jnp.float32)),
        grid=(1,),
        in_specs=[_full_spec((P, CKK)),
                  _full_spec((1, OUT)),
                  _full_spec(pk["conv_wb"].shape),
                  _full_spec(pk["fc_wb"].shape),
                  _full_spec(pk["qkv_wb"].shape),
                  _full_spec(pk["o_wb"].shape),
                  _full_spec(pk["ln"].shape),
                  _full_spec(pk["ffn1_wb"].shape),
                  _full_spec(pk["ffn2_wb"].shape),
                  _full_spec(pk["head_wb"].shape)],
        out_specs=[_full_spec((1, OUT_PAD)), _full_spec((1, D_MODEL))],
        compiler_params=pltpu.CompilerParams(dimension_semantics=("arbitrary",)),
    )(patches, gts_row, pk["conv_wb"], pk["fc_wb"], pk["qkv_wb"], pk["o_wb"],
      pk["ln"], pk["ffn1_wb"], pk["ffn2_wb"], pk["head_wb"])
    return out_pad[0, :OUT], x_row


_fused_step = jax.jit(_fused_step_impl)


# ---------------------------------------------------------------------------
# one-time parameter packing (weight|bias slabs, padded head)
# ---------------------------------------------------------------------------
def pack_params(p):
    wconv_t = p["conv_w"].reshape(C_OUT, CKK).T                         # (27, 8)
    conv_wb = jnp.concatenate([wconv_t, p["conv_b"][None, :]], axis=0)  # (28, 8)
    fc_wb = jnp.concatenate([p["fc_w"], p["fc_b"][None, :]], axis=0)    # (9, 27)
    qkv_w = jnp.concatenate([p["wq"], p["wk"], p["wv"]], axis=1)        # (32, 96)
    qkv_b = jnp.concatenate([p["bq"], p["bk"], p["bv"]])[None, :]       # (1, 96)
    qkv_wb = jnp.concatenate([qkv_w, qkv_b], axis=0)                    # (33, 96)
    o_wb = jnp.concatenate([p["wo"], p["bo"][None, :]], axis=0)         # (33, 32)
    ln = jnp.stack([p["ln1_g"], p["ln1_b"], p["ln2_g"], p["ln2_b"]])    # (4, 32)
    ffn1_wb = jnp.concatenate([p["w1"], p["b1"][None, :]], axis=0)      # (33, 64)
    ffn2_wb = jnp.concatenate([p["w2"], p["b2"][None, :]], axis=0)      # (65, 32)
    wh_pad = jnp.zeros((D_MODEL, OUT_PAD), jnp.float32).at[:, :OUT].set(p["wh"])
    bh_pad = jnp.zeros((1, OUT_PAD), jnp.float32).at[:, :OUT].set(p["bh"][None, :])
    head_wb = jnp.concatenate([wh_pad, bh_pad], axis=0)                 # (33, 128)
    return {"conv_wb": conv_wb, "fc_wb": fc_wb, "qkv_wb": qkv_wb, "o_wb": o_wb,
            "ln": ln, "ffn1_wb": ffn1_wb, "ffn2_wb": ffn2_wb, "head_wb": head_wb}


# ---------------------------------------------------------------------------
# MakeNet wrapper reproducing the PyTorch module's stateful semantics
# ---------------------------------------------------------------------------
class MakeNetPallas:
    def __init__(self, params, seq_len):
        self.packed = pack_params(params)
        self.seq_len = seq_len
        self.is_init = True
        self.frames, self.gts = None, None
        self.input = None
        self._out = None
        # TODO(synk): torch .detach() in pull_frames/pull_gts has no Pallas/JAX
        # equivalent needed here (arrays are already non-differentiated values).

    def refresh(self, frame, gt):
        """Fused refresh+forward: one jit call, one Pallas kernel."""
        gts = gt[None, :] if self.is_init else jnp.zeros((1, OUT), jnp.float32)
        self.is_init = False
        out5, x_row = _fused_step(frame, gts, self.packed)
        self.gts = gts
        self.frames = x_row[:, :FEAT]        # == self.cnn(frame.unsqueeze(0))
        self.input = x_row[None]             # == cat([frames, gts], 1).unsqueeze(0)
        self._out = out5                     # transformer(self.input), cached

    def forward(self):
        # transformer output for the current self.input; computed fused with refresh()
        return self._out

    def clear(self):
        self.is_init = True
        self.gts = None
        self.frames = None
        self._out = None

    @staticmethod
    def init_seq(elem, l):
        return jnp.broadcast_to(elem, (l, elem.shape[1]))

    def pull_frames(self, new_frame):
        return jnp.concatenate([new_frame, self.frames[:-1]], axis=0)

    def pull_gts(self, gt):
        self.gts = jnp.concatenate([gt, self.gts[:-1]], axis=0)


# ---------------------------------------------------------------------------
# deterministic parameter construction (same architecture as previous version)
# ---------------------------------------------------------------------------
def make_params(key):
    ks = jax.random.split(key, 16)

    def w(k, shape, fan_in):
        return jax.random.normal(k, shape, jnp.float32) / math.sqrt(fan_in)

    return {
        "conv_w": w(ks[0], (C_OUT, C_IN, K, K), C_IN * K * K),
        "conv_b": jnp.zeros((C_OUT,), jnp.float32),
        "fc_w":   w(ks[1], (C_OUT, FEAT), C_OUT),
        "fc_b":   jnp.zeros((FEAT,), jnp.float32),
        "wq": w(ks[2], (D_MODEL, D_MODEL), D_MODEL), "bq": jnp.zeros((D_MODEL,), jnp.float32),
        "wk": w(ks[3], (D_MODEL, D_MODEL), D_MODEL), "bk": jnp.zeros((D_MODEL,), jnp.float32),
        "wv": w(ks[4], (D_MODEL, D_MODEL), D_MODEL), "bv": jnp.zeros((D_MODEL,), jnp.float32),
        "wo": w(ks[5], (D_MODEL, D_MODEL), D_MODEL), "bo": jnp.zeros((D_MODEL,), jnp.float32),
        "ln1_g": jnp.ones((D_MODEL,), jnp.float32), "ln1_b": jnp.zeros((D_MODEL,), jnp.float32),
        "w1": w(ks[6], (D_MODEL, FFN), D_MODEL),  "b1": jnp.zeros((FFN,), jnp.float32),
        "w2": w(ks[7], (FFN, D_MODEL), FFN),      "b2": jnp.zeros((D_MODEL,), jnp.float32),
        "ln2_g": jnp.ones((D_MODEL,), jnp.float32), "ln2_b": jnp.zeros((D_MODEL,), jnp.float32),
        "wh": w(ks[8], (D_MODEL, OUT), D_MODEL),  "bh": jnp.zeros((OUT,), jnp.float32),
    }


if __name__ == "__main__":
    key = jax.random.PRNGKey(0)
    kf, kg, kf2, kp = jax.random.split(key, 4)

    frame = jax.random.normal(kf, (C_IN, H, W), jnp.float32)   # torch(3, width, height)
    gt = jax.random.normal(kg, (OUT,), jnp.float32)            # torch(5)

    net = MakeNetPallas(make_params(kp), seq_len=8)

    # first step (is_init path: gts = gt)
    net.refresh(frame, gt)
    out1 = jax.block_until_ready(net.forward())
    assert out1.shape == (OUT,), out1.shape
    assert bool(jnp.all(jnp.isfinite(out1)))

    # second step (non-init path: gts = zeros), reuses the compiled fused kernel
    frame2 = jax.random.normal(kf2, (C_IN, H, W), jnp.float32)
    net.refresh(frame2, gt)
    out2 = jax.block_until_ready(net.forward())
    assert out2.shape == (OUT,), out2.shape
    assert bool(jnp.all(jnp.isfinite(out2)))

    print("KERNEL_OK")
</pallas_src>

<mosaic_0001>
module attributes {stable_mosaic.version = 11 : i64} {
  func.func @_makenet_kernel(%arg0: i32, %arg1: memref<64x27xf32, #tpu.memory_space<vmem>>, %arg2: memref<1x5xf32, #tpu.memory_space<vmem>>, %arg3: memref<28x8xf32, #tpu.memory_space<vmem>>, %arg4: memref<9x27xf32, #tpu.memory_space<vmem>>, %arg5: memref<33x96xf32, #tpu.memory_space<vmem>>, %arg6: memref<33x32xf32, #tpu.memory_space<vmem>>, %arg7: memref<4x32xf32, #tpu.memory_space<vmem>>, %arg8: memref<33x64xf32, #tpu.memory_space<vmem>>, %arg9: memref<65x32xf32, #tpu.memory_space<vmem>>, %arg10: memref<33x128xf32, #tpu.memory_space<vmem>>, %arg11: memref<1x128xf32, #tpu.memory_space<vmem>>, %arg12: memref<1x32xf32, #tpu.memory_space<vmem>>) attributes {dimension_semantics = [#tpu.dimension_semantics<arbitrary>], iteration_bounds = array<i64: 1>, scalar_prefetch = 0 : i64, scratch_operands = 0 : i64, tpu.core_type = #tpu.core_type<tc>, window_params = [{pipeline_mode = #tpu.pipeline_mode<synchronous>, transform_indices = @transform_0, window_bounds = array<i64: 64, 27>}, {pipeline_mode = #tpu.pipeline_mode<synchronous>, transform_indices = @transform_1, window_bounds = array<i64: 1, 5>}, {pipeline_mode = #tpu.pipeline_mode<synchronous>, transform_indices = @transform_2, window_bounds = array<i64: 28, 8>}, {pipeline_mode = #tpu.pipeline_mode<synchronous>, transform_indices = @transform_3, window_bounds = array<i64: 9, 27>}, {pipeline_mode = #tpu.pipeline_mode<synchronous>, transform_indices = @transform_4, window_bounds = array<i64: 33, 96>}, {pipeline_mode = #tpu.pipeline_mode<synchronous>, transform_indices = @transform_5, window_bounds = array<i64: 33, 32>}, {pipeline_mode = #tpu.pipeline_mode<synchronous>, transform_indices = @transform_6, window_bounds = array<i64: 4, 32>}, {pipeline_mode = #tpu.pipeline_mode<synchronous>, transform_indices = @transform_7, window_bounds = array<i64: 33, 64>}, {pipeline_mode = #tpu.pipeline_mode<synchronous>, transform_indices = @transform_8, window_bounds = array<i64: 65, 32>}, {pipeline_mode = #tpu.pipeline_mode<synchronous>, transform_indices = @transform_9, window_bounds = array<i64: 33, 128>}, {pipeline_mode = #tpu.pipeline_mode<synchronous>, transform_indices = @transform_10, window_bounds = array<i64: 1, 128>}, {pipeline_mode = #tpu.pipeline_mode<synchronous>, transform_indices = @transform_11, window_bounds = array<i64: 1, 32>}]} {
    %c0 = arith.constant 0 : index
    %c0_0 = arith.constant 0 : index
    %0 = vector.load %arg1[%c0, %c0_0] : memref<64x27xf32, #tpu.memory_space<vmem>>, vector<64x27xf32>
    %c0_1 = arith.constant 0 : index
    %c0_2 = arith.constant 0 : index
    %1 = vector.load %arg3[%c0_1, %c0_2] : memref<28x8xf32, #tpu.memory_space<vmem>>, vector<27x8xf32>
    %cst = arith.constant dense<0.000000e+00> : vector<64x8xf32>
    %2 = tpu.matmul %0, %1, %cst {dimension_numbers = #tpu.dot_dimension_numbers<[1], [0], [0], [1], [0, 0, 1, 1], [], []>} : vector<64x27xf32>, vector<27x8xf32>, vector<64x8xf32> -> vector<64x8xf32>
    %c27 = arith.constant 27 : index
    %c0_3 = arith.constant 0 : index
    %3 = vector.load %arg3[%c27, %c0_3] : memref<28x8xf32, #tpu.memory_space<vmem>>, vector<1x8xf32>
    %4 = vector.broadcast %3 : vector<1x8xf32> to vector<64x8xf32>
    %5 = arith.addf %2, %4 : vector<64x8xf32>
    %cst_4 = arith.constant 0.000000e+00 : f32
    %6 = vector.broadcast %cst_4 : f32 to vector<64x8xf32>
    %7 = arith.maximumf %5, %6 : vector<64x8xf32>
    %cst_5 = arith.constant dense<0.000000e+00> : vector<8xf32>
    %8 = vector.multi_reduction <add>, %7, %cst_5 [0] : vector<64x8xf32> to vector<8xf32>
    %9 = vector.shape_cast %8 : vector<8xf32> to vector<1x8xf32>
    %cst_6 = arith.constant 6.400000e+01 : f32
    %10 = vector.broadcast %cst_6 : f32 to vector<1x8xf32>
    %11 = arith.divf %9, %10 : vector<1x8xf32>
    %c0_7 = arith.constant 0 : index
    %c0_8 = arith.constant 0 : index
    %12 = vector.load %arg4[%c0_7, %c0_8] : memref<9x27xf32, #tpu.memory_space<vmem>>, vector<8x27xf32>
    %cst_9 = arith.constant dense<0.000000e+00> : vector<1x27xf32>
    %13 = tpu.matmul %11, %12, %cst_9 {dimension_numbers = #tpu.dot_dimension_numbers<[1], [0], [0], [1], [0, 0, 1, 1], [], []>} : vector<1x8xf32>, vector<8x27xf32>, vector<1x27xf32> -> vector<1x27xf32>
    %c8 = arith.constant 8 : index
    %c0_10 = arith.constant 0 : index
    %14 = vector.load %arg4[%c8, %c0_10] : memref<9x27xf32, #tpu.memory_space<vmem>>, vector<1x27xf32>
    %15 = arith.addf %13, %14 : vector<1x27xf32>
    %c0_11 = arith.constant 0 : index
    %c0_12 = arith.constant 0 : index
    %16 = vector.load %arg2[%c0_11, %c0_12] : memref<1x5xf32, #tpu.memory_space<vmem>>, vector<1x5xf32>
    %17 = tpu.concatenate %15, %16 in 1 : vector<1x27xf32>, vector<1x5xf32> -> vector<1x32xf32>
    %c0_13 = arith.constant 0 : index
    %c0_14 = arith.constant 0 : index
    %18 = vector.load %arg5[%c0_13, %c0_14] : memref<33x96xf32, #tpu.memory_space<vmem>>, vector<32x96xf32>
    %cst_15 = arith.constant dense<0.000000e+00> : vector<1x96xf32>
    %19 = tpu.matmul %17, %18, %cst_15 {dimension_numbers = #tpu.dot_dimension_numbers<[1], [0], [0], [1], [0, 0, 1, 1], [], []>} : vector<1x32xf32>, vector<32x96xf32>, vector<1x96xf32> -> vector<1x96xf32>
    %c32 = arith.constant 32 : index
    %c0_16 = arith.constant 0 : index
    %20 = vector.load %arg5[%c32, %c0_16] : memref<33x96xf32, #tpu.memory_space<vmem>>, vector<1x96xf32>
    %21 = arith.addf %19, %20 : vector<1x96xf32>
    %22 = vector.extract_strided_slice %21 {offsets = [0, 64], sizes = [1, 32], strides = [1, 1]} : vector<1x96xf32> to vector<1x32xf32>
    %c0_17 = arith.constant 0 : index
    %c0_18 = arith.constant 0 : index
    %23 = vector.load %arg6[%c0_17, %c0_18] : memref<33x32xf32, #tpu.memory_space<vmem>>, vector<32x32xf32>
    %cst_19 = arith.constant dense<0.000000e+00> : vector<1x32xf32>
    %24 = tpu.matmul %22, %23, %cst_19 {dimension_numbers = #tpu.dot_dimension_numbers<[1], [0], [0], [1], [0, 0, 1, 1], [], []>} : vector<1x32xf32>, vector<32x32xf32>, vector<1x32xf32> -> vector<1x32xf32>
    %c32_20 = arith.constant 32 : index
    %c0_21 = arith.constant 0 : index
    %25 = vector.load %arg6[%c32_20, %c0_21] : memref<33x32xf32, #tpu.memory_space<vmem>>, vector<1x32xf32>
    %26 = arith.addf %24, %25 : vector<1x32xf32>
    %27 = arith.addf %17, %26 : vector<1x32xf32>
    %cst_22 = arith.constant dense<0.000000e+00> : vector<1xf32>
    %28 = vector.multi_reduction <add>, %27, %cst_22 [1] : vector<1x32xf32> to vector<1xf32>
    %29 = vector.shape_cast %28 : vector<1xf32> to vector<1x1xf32>
    %cst_23 = arith.constant 3.200000e+01 : f32
    %30 = vector.broadcast %cst_23 : f32 to vector<1x1xf32>
    %31 = arith.divf %29, %30 : vector<1x1xf32>
    %32 = vector.broadcast %31 : vector<1x1xf32> to vector<1x32xf32>
    %33 = arith.subf %27, %32 : vector<1x32xf32>
    %34 = arith.mulf %33, %33 : vector<1x32xf32>
    %cst_24 = arith.constant dense<0.000000e+00> : vector<1xf32>
    %35 = vector.multi_reduction <add>, %34, %cst_24 [1] : vector<1x32xf32> to vector<1xf32>
    %36 = vector.shape_cast %35 : vector<1xf32> to vector<1x1xf32>
    %cst_25 = arith.constant 3.200000e+01 : f32
    %37 = vector.broadcast %cst_25 : f32 to vector<1x1xf32>
    %38 = arith.divf %36, %37 : vector<1x1xf32>
    %39 = vector.broadcast %31 : vector<1x1xf32> to vector<1x32xf32>
    %40 = arith.subf %27, %39 : vector<1x32xf32>
    %cst_26 = arith.constant 9.99999974E-6 : f32
    %41 = vector.broadcast %cst_26 : f32 to vector<1x1xf32>
    %42 = arith.addf %38, %41 : vector<1x1xf32>
    %43 = math.rsqrt %42 : vector<1x1xf32>
    %44 = vector.broadcast %43 : vector<1x1xf32> to vector<1x32xf32>
    %45 = arith.mulf %40, %44 : vector<1x32xf32>
    %c0_27 = arith.constant 0 : index
    %c0_28 = arith.constant 0 : index
    %46 = vector.load %arg7[%c0_27, %c0_28] : memref<4x32xf32, #tpu.memory_space<vmem>>, vector<1x32xf32>
    %47 = arith.mulf %45, %46 : vector<1x32xf32>
    %c1 = arith.constant 1 : index
    %c0_29 = arith.constant 0 : index
    %48 = vector.load %arg7[%c1, %c0_29] : memref<4x32xf32, #tpu.memory_space<vmem>>, vector<1x32xf32>
    %49 = arith.addf %47, %48 : vector<1x32xf32>
    %c0_30 = arith.constant 0 : index
    %c0_31 = arith.constant 0 : index
    %50 = vector.load %arg8[%c0_30, %c0_31] : memref<33x64xf32, #tpu.memory_space<vmem>>, vector<32x64xf32>
    %cst_32 = arith.constant dense<0.000000e+00> : vector<1x64xf32>
    %51 = tpu.matmul %49, %50, %cst_32 {dimension_numbers = #tpu.dot_dimension_numbers<[1], [0], [0], [1], [0, 0, 1, 1], [], []>} : vector<1x32xf32>, vector<32x64xf32>, vector<1x64xf32> -> vector<1x64xf32>
    %c32_33 = arith.constant 32 : index
    %c0_34 = arith.constant 0 : index
    %52 = vector.load %arg8[%c32_33, %c0_34] : memref<33x64xf32, #tpu.memory_space<vmem>>, vector<1x64xf32>
    %53 = arith.addf %51, %52 : vector<1x64xf32>
    %cst_35 = arith.constant 0.000000e+00 : f32
    %54 = vector.broadcast %cst_35 : f32 to vector<1x64xf32>
    %55 = arith.maximumf %53, %54 : vector<1x64xf32>
    %c0_36 = arith.constant 0 : index
    %c0_37 = arith.constant 0 : index
    %56 = vector.load %arg9[%c0_36, %c0_37] : memref<65x32xf32, #tpu.memory_space<vmem>>, vector<64x32xf32>
    %cst_38 = arith.constant dense<0.000000e+00> : vector<1x32xf32>
    %57 = tpu.matmul %55, %56, %cst_38 {dimension_numbers = #tpu.dot_dimension_numbers<[1], [0], [0], [1], [0, 0, 1, 1], [], []>} : vector<1x64xf32>, vector<64x32xf32>, vector<1x32xf32> -> vector<1x32xf32>
    %c64 = arith.constant 64 : index
    %c0_39 = arith.constant 0 : index
    %58 = vector.load %arg9[%c64, %c0_39] : memref<65x32xf32, #tpu.memory_space<vmem>>, vector<1x32xf32>
    %59 = arith.addf %57, %58 : vector<1x32xf32>
    %60 = arith.addf %49, %59 : vector<1x32xf32>
    %cst_40 = arith.constant dense<0.000000e+00> : vector<1xf32>
    %61 = vector.multi_reduction <add>, %60, %cst_40 [1] : vector<1x32xf32> to vector<1xf32>
    %62 = vector.shape_cast %61 : vector<1xf32> to vector<1x1xf32>
    %cst_41 = arith.constant 3.200000e+01 : f32
    %63 = vector.broadcast %cst_41 : f32 to vector<1x1xf32>
    %64 = arith.divf %62, %63 : vector<1x1xf32>
    %65 = vector.broadcast %64 : vector<1x1xf32> to vector<1x32xf32>
    %66 = arith.subf %60, %65 : vector<1x32xf32>
    %67 = arith.mulf %66, %66 : vector<1x32xf32>
    %cst_42 = arith.constant dense<0.000000e+00> : vector<1xf32>
    %68 = vector.multi_reduction <add>, %67, %cst_42 [1] : vector<1x32xf32> to vector<1xf32>
    %69 = vector.shape_cast %68 : vector<1xf32> to vector<1x1xf32>
    %cst_43 = arith.constant 3.200000e+01 : f32
    %70 = vector.broadcast %cst_43 : f32 to vector<1x1xf32>
    %71 = arith.divf %69, %70 : vector<1x1xf32>
    %72 = vector.broadcast %64 : vector<1x1xf32> to vector<1x32xf32>
    %73 = arith.subf %60, %72 : vector<1x32xf32>
    %cst_44 = arith.constant 9.99999974E-6 : f32
    %74 = vector.broadcast %cst_44 : f32 to vector<1x1xf32>
    %75 = arith.addf %71, %74 : vector<1x1xf32>
    %76 = math.rsqrt %75 : vector<1x1xf32>
    %77 = vector.broadcast %76 : vector<1x1xf32> to vector<1x32xf32>
    %78 = arith.mulf %73, %77 : vector<1x32xf32>
    %c2 = arith.constant 2 : index
    %c0_45 = arith.constant 0 : index
    %79 = vector.load %arg7[%c2, %c0_45] : memref<4x32xf32, #tpu.memory_space<vmem>>, vector<1x32xf32>
    %80 = arith.mulf %78, %79 : vector<1x32xf32>
    %c3 = arith.constant 3 : index
    %c0_46 = arith.constant 0 : index
    %81 = vector.load %arg7[%c3, %c0_46] : memref<4x32xf32, #tpu.memory_space<vmem>>, vector<1x32xf32>
    %82 = arith.addf %80, %81 : vector<1x32xf32>
    %c0_47 = arith.constant 0 : index
    %c0_48 = arith.constant 0 : index
    %83 = vector.load %arg10[%c0_47, %c0_48] : memref<33x128xf32, #tpu.memory_space<vmem>>, vector<32x128xf32>
    %cst_49 = arith.constant dense<0.000000e+00> : vector<1x128xf32>
    %84 = tpu.matmul %82, %83, %cst_49 {dimension_numbers = #tpu.dot_dimension_numbers<[1], [0], [0], [1], [0, 0, 1, 1], [], []>} : vector<1x32xf32>, vector<32x128xf32>, vector<1x128xf32> -> vector<1x128xf32>
    %c32_50 = arith.constant 32 : index
    %c0_51 = arith.constant 0 : index
    %85 = vector.load %arg10[%c32_50, %c0_51] : memref<33x128xf32, #tpu.memory_space<vmem>>, vector<1x128xf32>
    %86 = arith.addf %84, %85 : vector<1x128xf32>
    %c0_52 = arith.constant 0 : index
    %c0_53 = arith.constant 0 : index
    %87 = vector.load %arg11[%c0_52, %c0_53] : memref<1x128xf32, #tpu.memory_space<vmem>>, vector<1x128xf32>
    tpu.vector_store %arg11[%c0_52, %c0_53], %86 {strides = array<i32>} : memref<1x128xf32, #tpu.memory_space<vmem>>, vector<1x128xf32>,
    %c0_54 = arith.constant 0 : index
    %c0_55 = arith.constant 0 : index
    %88 = vector.load %arg12[%c0_54, %c0_55] : memref<1x32xf32, #tpu.memory_space<vmem>>, vector<1x32xf32>
    tpu.vector_store %arg12[%c0_54, %c0_55], %17 {strides = array<i32>} : memref<1x32xf32, #tpu.memory_space<vmem>>, vector<1x32xf32>,
    return
  }
  func.func @transform_0(%arg0: i32) -> (i32, i32) {
    %c0_i32 = arith.constant 0 : i32
    %c0_i32_0 = arith.constant 0 : i32
    %c0_i32_1 = arith.constant 0 : i32
    return %c0_i32, %c0_i32_0 : i32, i32
  }
  func.func @transform_1(%arg0: i32) -> (i32, i32) {
    %c0_i32 = arith.constant 0 : i32
    %c0_i32_0 = arith.constant 0 : i32
    %c0_i32_1 = arith.constant 0 : i32
    return %c0_i32, %c0_i32_0 : i32, i32
  }
  func.func @transform_2(%arg0: i32) -> (i32, i32) {
    %c0_i32 = arith.constant 0 : i32
    %c0_i32_0 = arith.constant 0 : i32
    %c0_i32_1 = arith.constant 0 : i32
    return %c0_i32, %c0_i32_0 : i32, i32
  }
  func.func @transform_3(%arg0: i32) -> (i32, i32) {
    %c0_i32 = arith.constant 0 : i32
    %c0_i32_0 = arith.constant 0 : i32
    %c0_i32_1 = arith.constant 0 : i32
    return %c0_i32, %c0_i32_0 : i32, i32
  }
  func.func @transform_4(%arg0: i32) -> (i32, i32) {
    %c0_i32 = arith.constant 0 : i32
    %c0_i32_0 = arith.constant 0 : i32
    %c0_i32_1 = arith.constant 0 : i32
    return %c0_i32, %c0_i32_0 : i32, i32
  }
  func.func @transform_5(%arg0: i32) -> (i32, i32) {
    %c0_i32 = arith.constant 0 : i32
    %c0_i32_0 = arith.constant 0 : i32
    %c0_i32_1 = arith.constant 0 : i32
    return %c0_i32, %c0_i32_0 : i32, i32
  }
  func.func @transform_6(%arg0: i32) -> (i32, i32) {
    %c0_i32 = arith.constant 0 : i32
    %c0_i32_0 = arith.constant 0 : i32
    %c0_i32_1 = arith.constant 0 : i32
    return %c0_i32, %c0_i32_0 : i32, i32
  }
  func.func @transform_7(%arg0: i32) -> (i32, i32) {
    %c0_i32 = arith.constant 0 : i32
    %c0_i32_0 = arith.constant 0 : i32
    %c0_i32_1 = arith.constant 0 : i32
    return %c0_i32, %c0_i32_0 : i32, i32
  }
  func.func @transform_8(%arg0: i32) -> (i32, i32) {
    %c0_i32 = arith.constant 0 : i32
    %c0_i32_0 = arith.constant 0 : i32
    %c0_i32_1 = arith.constant 0 : i32
    return %c0_i32, %c0_i32_0 : i32, i32
  }
  func.func @transform_9(%arg0: i32) -> (i32, i32) {
    %c0_i32 = arith.constant 0 : i32
    %c0_i32_0 = arith.constant 0 : i32
    %c0_i32_1 = arith.constant 0 : i32
    return %c0_i32, %c0_i32_0 : i32, i32
  }
  func.func @transform_10(%arg0: i32) -> (i32, i32) {
    %c0_i32 = arith.constant 0 : i32
    %c0_i32_0 = arith.constant 0 : i32
    %c0_i32_1 = arith.constant 0 : i32
    return %c0_i32, %c0_i32_0 : i32, i32
  }
  func.func @transform_11(%arg0: i32) -> (i32, i32) {
    %c0_i32 = arith.constant 0 : i32
    %c0_i32_0 = arith.constant 0 : i32
    %c0_i32_1 = arith.constant 0 : i32
    return %c0_i32, %c0_i32_0 : i32, i32
  }
}

</mosaic_0001>

<llo_original>
// kernel: _fused_step_impl.1
$region0: #{_fused_step_impl.1}
  #allocation0 [shape = 'u32[]', space=smem, size = 0x4, offset = 0x4, fixed_abs, tag = 'smem constant byte address 0x4 - core index']
  #allocation1 [shape = 'u32[144,128]{1,0:T(1,128)}', space=vmem, size = 0x12000, scoped, tag = 'internal scratch']
  %s0 = inlined_call_operand.vmem [shape: f32[64,27], index: 0, kind: input, shape index: {}]
  %s1 = inlined_call_operand.vmem [shape: f32[1,5], index: 1, kind: input, shape index: {}]
  %s2 = inlined_call_operand.vmem [shape: f32[28,8], index: 2, kind: input, shape index: {}]
  %s3 = inlined_call_operand.vmem [shape: f32[9,27], index: 3, kind: input, shape index: {}]
  %s4 = inlined_call_operand.vmem [shape: f32[33,96], index: 4, kind: input, shape index: {}]
  %s5 = inlined_call_operand.vmem [shape: f32[33,32], index: 5, kind: input, shape index: {}]
  %s6 = inlined_call_operand.vmem [shape: f32[4,32], index: 6, kind: input, shape index: {}]
  %s7 = inlined_call_operand.vmem [shape: f32[33,64], index: 7, kind: input, shape index: {}]
  %s8 = inlined_call_operand.vmem [shape: f32[65,32], index: 8, kind: input, shape index: {}]
  %s9 = inlined_call_operand.vmem [shape: f32[33,128], index: 9, kind: input, shape index: {}]
  %s10 = inlined_call_operand.vmem [shape: f32[1,128], index: 10, kind: output, shape index: {0}]
  %s11 = inlined_call_operand.hbm [shape: f32[1,32], index: 11, kind: output, shape index: {1}]
  %12 = xla_tuple %s10, %s11
  %s13 = sld [smem:[#allocation0]]
  $region58: #{_fused_step_impl.1} parent=0
    _
  %s15 = ssub.s32 1, %s13
  %s16 = scalar_select 0, %s15, %s13
  $region1: #{_fused_step_impl.1} parent=0
    #allocation2 [shape = 'u8[512]{0}', space=vmem, size = 0x400, scoped, tag = 'output window, operand 1, single buffered']
    #allocation3 [shape = 's32[1]{0}', space=sflag, size = 0x4, scoped, tag = 'scoped memory for _fused_step_impl.1']
    %17 = vsyncpa [#allocation3], 0
    // Predicated region
    $region2: #{_fused_step_impl.1} parent=1 // pred_check
      _
    $region3: #{_fused_step_impl.1} parent=1 // pred_check_branch
      %19 = sbr.rel (0) target = $region5
    $region4: #{_fused_step_impl.1} parent=1 // pred_region
      _
    $region5: #{_fused_step_impl.1} parent=1 // pred_fallthru
      _
    // Predicated region
    $region6: #{_fused_step_impl.1} parent=1 // pred_check
      _
    $region7: #{_fused_step_impl.1} parent=1 // pred_check_branch
      %21 = sbr.rel (0) target = $region9
    $region8: #{_fused_step_impl.1} parent=1 // pred_region
      _
    $region9: #{_fused_step_impl.1} parent=1 // pred_fallthru
      _
    // Predicated region
    $region10: #{_fused_step_impl.1} parent=1 // pred_check
      _
    $region11: #{_fused_step_impl.1} parent=1 // pred_check_branch
      %23 = sbr.rel (0) target = $region13
    $region12: #{_fused_step_impl.1} parent=1 // pred_region
      _
    $region13: #{_fused_step_impl.1} parent=1 // pred_fallthru
      _
    // Predicated region
    $region14: #{_fused_step_impl.1} parent=1 // pred_check
      _
    $region15: #{_fused_step_impl.1} parent=1 // pred_check_branch
      %25 = sbr.rel (0) target = $region17
    $region16: #{_fused_step_impl.1} parent=1 // pred_region
      _
    $region17: #{_fused_step_impl.1} parent=1 // pred_fallthru
      _
    // Predicated region
    $region18: #{_fused_step_impl.1} parent=1 // pred_check
      _
    $region19: #{_fused_step_impl.1} parent=1 // pred_check_branch
      %27 = sbr.rel (0) target = $region21
    $region20: #{_fused_step_impl.1} parent=1 // pred_region
      _
    $region21: #{_fused_step_impl.1} parent=1 // pred_fallthru
      _
    // Predicated region
    $region22: #{_fused_step_impl.1} parent=1 // pred_check
      _
    $region23: #{_fused_step_impl.1} parent=1 // pred_check_branch
      %29 = sbr.rel (0) target = $region25
    $region24: #{_fused_step_impl.1} parent=1 // pred_region
      _
    $region25: #{_fused_step_impl.1} parent=1 // pred_fallthru
      _
    // Predicated region
    $region26: #{_fused_step_impl.1} parent=1 // pred_check
      _
    $region27: #{_fused_step_impl.1} parent=1 // pred_check_branch
      %31 = sbr.rel (0) target = $region29
    $region28: #{_fused_step_impl.1} parent=1 // pred_region
      _
    $region29: #{_fused_step_impl.1} parent=1 // pred_fallthru
      _
    // Predicated region
    $region30: #{_fused_step_impl.1} parent=1 // pred_check
      _
    $region31: #{_fused_step_impl.1} parent=1 // pred_check_branch
      %33 = sbr.rel (0) target = $region33
    $region32: #{_fused_step_impl.1} parent=1 // pred_region
      _
    $region33: #{_fused_step_impl.1} parent=1 // pred_fallthru
      _
    // Predicated region
    $region34: #{_fused_step_impl.1} parent=1 // pred_check
      _
    $region35: #{_fused_step_impl.1} parent=1 // pred_check_branch
      %35 = sbr.rel (0) target = $region37
    $region36: #{_fused_step_impl.1} parent=1 // pred_region
      _
    $region37: #{_fused_step_impl.1} parent=1 // pred_fallthru
      _
    // Predicated region
    $region38: #{_fused_step_impl.1} parent=1 // pred_check
      _
    $region39: #{_fused_step_impl.1} parent=1 // pred_check_branch
      %37 = sbr.rel (0) target = $region41
    $region40: #{_fused_step_impl.1} parent=1 // pred_region
      _
    $region41: #{_fused_step_impl.1} parent=1 // pred_fallthru
      _
    %v38 = vld [vmem:[%s0] sm:$0xff]
    %v39 = vld [vmem:[%s0 + $0x8] sm:$0xff]
    %v40 = vld [vmem:[%s0 + $0x10] sm:$0xff]
    %v41 = vld [vmem:[%s0 + $0x18] sm:$0xff]
    %v42 = vld [vmem:[%s0 + $0x20] sm:$0xff]
    %v43 = vld [vmem:[%s0 + $0x28] sm:$0xff]
    %v44 = vld [vmem:[%s0 + $0x30] sm:$0xff]
    %v45 = vld [vmem:[%s0 + $0x38] sm:$0xff]
    %v46 = vld [vmem:[%s2] sm:$0xff]
    %v47 = vld [vmem:[%s2 + $0x8] sm:$0xff]
    %v48 = vld [vmem:[%s2 + $0x10] sm:$0xff]
    %v49 = vld [vmem:[%s2 + $0x18] sm:$0x7]
    %v50 = vld [vmem:[%s2 + $0x1b] sm:$0x1]
    %v51 = vlaneseq
    %v52 = vshrl.u32 %v51, 7
    %v53 = vsub.s32 0, %v52
    %v54 = vrot.slane %v50, %v53
    %vm55 = vcmask 220160
    %v57 = vsel %vm55, %v38, 0
    %v60 = vsel %vm55, %v39, 0
    %v63 = vsel %vm55, %v40, 0
    %v66 = vsel %vm55, %v41, 0
    %v69 = vsel %vm55, %v42, 0
    %v72 = vsel %vm55, %v43, 0
    %v75 = vsel %vm55, %v44, 0
    %v78 = vsel %vm55, %v45, 0
    %vm80 = vcmask 1042432
    %v82 = vsel %vm80, %v49, 0
    %84 = vmatprep.subr.mxu0 0.0
    %85 = vmatpush1.msra.mxu0 %v46
    %86 = vmatprep.subr.mxu0 0.0
    %87 = vmatpush1.msra.mxu0 %v47
    %88 = vmatprep.subr.mxu0 0.0
    %89 = vmatpush1.msra.mxu0 %v48
    %90 = vmatprep.subr.mxu0 0.0
    %91 = vmatpush1.msra.mxu0 %v82
    %92 = vmatprep.subr.mxu0 0.0
    %93 = vmatpush1.msra.mxu0 0.0
    %94 = vmatprep.subr.mxu0 0.0
    %95 = vmatpush1.msra.mxu0 0.0
    %96 = vmatprep.subr.mxu0 0.0
    %97 = vmatpush1.msra.mxu0 0.0
    %98 = vmatprep.subr.mxu0 0.0
    %99 = vmatpush1.msra.mxu0 0.0
    %100 = vmatprep.subr.mxu0 0.0
    %101 = vmatpush1.msra.mxu0 0.0
    %102 = vmatprep.subr.mxu0 0.0
    %103 = vmatpush1.msra.mxu0 0.0
    %104 = vmatprep.subr.mxu0 0.0
    %105 = vmatpush1.msra.mxu0 0.0
    %106 = vmatprep.subr.mxu0 0.0
    %107 = vmatpush1.msra.mxu0 0.0
    %108 = vmatprep.subr.mxu0 0.0
    %109 = vmatpush1.msra.mxu0 0.0
    %110 = vmatprep.subr.mxu0 0.0
    %111 = vmatpush1.msra.mxu0 0.0
    %112 = vmatprep.subr.mxu0 0.0
    %113 = vmatpush1.msra.mxu0 0.0
    %114 = vmatprep.subr.mxu0 0.0
    %115 = vmatpush1.msra.mxu0 0.0
    %116 = vmatprep.subr.mxu0 0.0
    %117 = vmatpush1.msra.mxu0 0.0
    %118 = vmatprep.subr.mxu0 0.0
    %119 = vmatpush1.msra.mxu0 0.0
    %120 = vmatprep.subr.mxu0 0.0
    %121 = vmatpush1.msra.mxu0 0.0
    %122 = vmatprep.subr.mxu0 0.0
    %123 = vmatpush1.msra.mxu0 0.0
    %124 = vmatprep.subr.mxu0 0.0
    %125 = vmatpush1.msra.mxu0 0.0
    %126 = vmatprep.subr.mxu0 0.0
    %127 = vmatpush1.msra.mxu0 0.0
    %128 = vmatprep.subr.mxu0 0.0
    %129 = vmatpush1.msra.mxu0 0.0
    %130 = vmatprep.subr.mxu0 0.0
    %131 = vmatpush1.msra.mxu0 0.0
    %132 = vmatprep.subr.mxu0 0.0
    %133 = vmatpush1.msra.mxu0 0.0
    %134 = vmatprep.subr.mxu0 0.0
    %135 = vmatpush1.msra.mxu0 0.0
    %136 = vmatprep.subr.mxu0 0.0
    %137 = vmatpush1.msra.mxu0 0.0
    %138 = vmatprep.subr.mxu0 0.0
    %139 = vmatpush1.msra.mxu0 0.0
    %140 = vmatprep.subr.mxu0 0.0
    %141 = vmatpush1.msra.mxu0 0.0
    %142 = vmatprep.subr.mxu0 0.0
    %143 = vmatpush1.msra.mxu0 0.0
    %144 = vmatprep.subr.mxu0 0.0
    %145 = vmatpush1.msra.mxu0 0.0
    %146 = vmatprep.subr.mxu0 0.0
    %147 = vmatpush1.msra.mxu0 0.0
    %148 = vmatprep.mubr.f32.mxu0 0.0
    %149 = vmatmul.mubr.f32.gmra.mrb[0].mxu0 %v57
    %v150 = vpop.f32.mrb[0].mxu0
    %v151 = vadd.f32 %v54, %v150
    %v152 = vpop.f32.mrb[0].mxu0
    %153 = vmatprep.mubr.f32.mxu0 0.0
    %154 = vmatmul.mubr.f32.gmra.mrb[0].mxu0 %v60
    %v155 = vpop.f32.mrb[0].mxu0
    %v156 = vadd.f32 %v54, %v155
    %v157 = vpop.f32.mrb[0].mxu0
    %158 = vmatprep.mubr.f32.mxu0 0.0
    %159 = vmatmul.mubr.f32.gmra.mrb[0].mxu0 %v63
    %v160 = vpop.f32.mrb[0].mxu0
    %v161 = vadd.f32 %v54, %v160
    %v162 = vpop.f32.mrb[0].mxu0
    %163 = vmatprep.mubr.f32.mxu0 0.0
    %164 = vmatmul.mubr.f32.gmra.mrb[0].mxu0 %v66
    %v165 = vpop.f32.mrb[0].mxu0
    %v166 = vadd.f32 %v54, %v165
    %v167 = vpop.f32.mrb[0].mxu0
    %168 = vmatprep.mubr.f32.mxu0 0.0
    %169 = vmatmul.mubr.f32.gmra.mrb[0].mxu0 %v69
    %v170 = vpop.f32.mrb[0].mxu0
    %v171 = vadd.f32 %v54, %v170
    %v172 = vpop.f32.mrb[0].mxu0
    %173 = vmatprep.mubr.f32.mxu0 0.0
    %174 = vmatmul.mubr.f32.gmra.mrb[0].mxu0 %v72
    %v175 = vpop.f32.mrb[0].mxu0
    %v176 = vadd.f32 %v54, %v175
    %v177 = vpop.f32.mrb[0].mxu0
    %178 = vmatprep.mubr.f32.mxu0 0.0
    %179 = vmatmul.mubr.f32.gmra.mrb[0].mxu0 %v75
    %v180 = vpop.f32.mrb[0].mxu0
    %v181 = vadd.f32 %v54, %v180
    %v182 = vpop.f32.mrb[0].mxu0
    %183 = vmatprep.mubr.f32.mxu0 0.0
    %184 = vmatmul.mubr.f32.gmra.mrb[0].mxu0 %v78
    %v185 = vpop.f32.mrb[0].mxu0
    %v186 = vadd.f32 %v54, %v185
    %v187 = vpop.f32.mrb[0].mxu0
    %188 = vdwg.mxu0
    %v189 = vmax.f32 %v151, 0.0
    %v190 = vmax.f32 %v156, 0.0
    %v191 = vmax.f32 %v161, 0.0
    %v192 = vmax.f32 %v166, 0.0
    %v193 = vmax.f32 %v171, 0.0
    %v194 = vmax.f32 %v176, 0.0
    %v195 = vmax.f32 %v181, 0.0
    %v196 = vmax.f32 %v186, 0.0
    %vm197 = vcmask 64512
    %v198 = vsel %vm197, %v189, 0.0
    %v199 = vsel %vm197, %v190, 0.0
    %v200 = vadd.f32 %v198, %v199
    %v201 = vsel %vm197, %v191, 0.0
    %v202 = vadd.f32 %v200, %v201
    %v203 = vsel %vm197, %v192, 0.0
    %v204 = vadd.f32 %v202, %v203
    %v205 = vsel %vm197, %v193, 0.0
    %v206 = vadd.f32 %v204, %v205
    %v207 = vsel %vm197, %v194, 0.0
    %v208 = vadd.f32 %v206, %v207
    %v209 = vsel %vm197, %v195, 0.0
    %v210 = vadd.f32 %v208, %v209
    %v211 = vsel %vm197, %v196, 0.0
    %v212 = vadd.f32 %v210, %v211
    %v213 = vrot.slane %v212, 4
    %v214 = vadd.f32 %v212, %v213
    %v215 = vrot.slane %v214, 2
    %v216 = vadd.f32 %v214, %v215
    %v217 = vrot.slane %v216, 1
    %v218 = vadd.f32 %v216, %v217
    %v219 = vrcp.pop 64.0
    %v220 = vmul.f32 %v218, %v219
    %v221 = vld [vmem:[%s3] sm:$0xff]
    %v222 = vld [vmem:[%s3 + $0x8] sm:$0x1]
    %v224 = vsel %vm197, %v220, 0
    %226 = vmatprep.subr.mxu0 0.0
    %227 = vmatpush1.msra.mxu0 %v221
    %228 = vmatprep.subr.mxu0 0.0
    %229 = vmatpush1.msra.mxu0 0.0
    %230 = vmatprep.subr.mxu0 0.0
    %231 = vmatpush1.msra.mxu0 0.0
    %232 = vmatprep.subr.mxu0 0.0
    %233 = vmatpush1.msra.mxu0 0.0
    %234 = vmatprep.subr.mxu0 0.0
    %235 = vmatpush1.msra.mxu0 0.0
    %236 = vmatprep.subr.mxu0 0.0
    %237 = vmatpush1.msra.mxu0 0.0
    %238 = vmatprep.subr.mxu0 0.0
    %239 = vmatpush1.msra.mxu0 0.0
    %240 = vmatprep.subr.mxu0 0.0
    %241 = vmatpush1.msra.mxu0 0.0
    %242 = vmatprep.subr.mxu0 0.0
    %243 = vmatpush1.msra.mxu0 0.0
    %244 = vmatprep.subr.mxu0 0.0
    %245 = vmatpush1.msra.mxu0 0.0
    %246 = vmatprep.subr.mxu0 0.0
    %247 = vmatpush1.msra.mxu0 0.0
    %248 = vmatprep.subr.mxu0 0.0
    %249 = vmatpush1.msra.mxu0 0.0
    %250 = vmatprep.subr.mxu0 0.0
    %251 = vmatpush1.msra.mxu0 0.0
    %252 = vmatprep.subr.mxu0 0.0
    %253 = vmatpush1.msra.mxu0 0.0
    %254 = vmatprep.subr.mxu0 0.0
    %255 = vmatpush1.msra.mxu0 0.0
    %256 = vmatprep.subr.mxu0 0.0
    %257 = vmatpush1.msra.mxu0 0.0
    %258 = vmatprep.subr.mxu0 0.0
    %259 = vmatpush1.msra.mxu0 0.0
    %260 = vmatprep.subr.mxu0 0.0
    %261 = vmatpush1.msra.mxu0 0.0
    %262 = vmatprep.subr.mxu0 0.0
    %263 = vmatpush1.msra.mxu0 0.0
    %264 = vmatprep.subr.mxu0 0.0
    %265 = vmatpush1.msra.mxu0 0.0
    %266 = vmatprep.subr.mxu0 0.0
    %267 = vmatpush1.msra.mxu0 0.0
    %268 = vmatprep.subr.mxu0 0.0
    %269 = vmatpush1.msra.mxu0 0.0
    %270 = vmatprep.subr.mxu0 0.0
    %271 = vmatpush1.msra.mxu0 0.0
    %272 = vmatprep.subr.mxu0 0.0
    %273 = vmatpush1.msra.mxu0 0.0
    %274 = vmatprep.subr.mxu0 0.0
    %275 = vmatpush1.msra.mxu0 0.0
    %276 = vmatprep.subr.mxu0 0.0
    %277 = vmatpush1.msra.mxu0 0.0
    %278 = vmatprep.subr.mxu0 0.0
    %279 = vmatpush1.msra.mxu0 0.0
    %280 = vmatprep.subr.mxu0 0.0
    %281 = vmatpush1.msra.mxu0 0.0
    %282 = vmatprep.subr.mxu0 0.0
    %283 = vmatpush1.msra.mxu0 0.0
    %284 = vmatprep.subr.mxu0 0.0
    %285 = vmatpush1.msra.mxu0 0.0
    %286 = vmatprep.subr.mxu0 0.0
    %287 = vmatpush1.msra.mxu0 0.0
    %288 = vmatprep.subr.mxu0 0.0
    %289 = vmatpush1.msra.mxu0 0.0
    %290 = vmatprep.mubr.f32.mxu0 0.0
    %291 = vmatmul.mubr.f32.gmra.mrb[0].mxu0 %v224
    %v292 = vpop.f32.mrb[0].mxu0
    %v293 = vadd.f32 %v222, %v292
    %v294 = vpop.f32.mrb[0].mxu0
    %295 = vdwg.mxu0
    %v296 = vld [vmem:[%s1] sm:$0x1]
    %v298 = vlaneseq
    %v299 = vshrl.u32 %v298, 7
    %v300 = vsub.s32 0, %v299
    %v301 = vrot.slane %v296, %v300
    %302 = vrot.lane.b32.xlu0 %v301, 27
    %v303 = vpop.permute.xlu0 %302
    %v305 = vsel %vm55, %v293, %v303
    %v306 = vld [vmem:[%s4] sm:$0xff]
    %v307 = vld [vmem:[%s4 + $0x8] sm:$0xff]
    %v308 = vld [vmem:[%s4 + $0x10] sm:$0xff]
    %v309 = vld [vmem:[%s4 + $0x18] sm:$0xff]
    %v310 = vld [vmem:[%s4 + $0x20] sm:$0x1]
    %vm311 = vcmask 261120
    %v313 = vsel %vm311, %v305, 0
    %315 = vmatprep.subr.mxu0 0.0
    %316 = vmatpush1.msra.mxu0 %v306
    %317 = vmatprep.subr.mxu0 0.0
    %318 = vmatpush1.msra.mxu0 %v307
    %319 = vmatprep.subr.mxu0 0.0
    %320 = vmatpush1.msra.mxu0 %v308
    %321 = vmatprep.subr.mxu0 0.0
    %322 = vmatpush1.msra.mxu0 %v309
    %323 = vmatprep.subr.mxu0 0.0
    %324 = vmatpush1.msra.mxu0 0.0
    %325 = vmatprep.subr.mxu0 0.0
    %326 = vmatpush1.msra.mxu0 0.0
    %327 = vmatprep.subr.mxu0 0.0
    %328 = vmatpush1.msra.mxu0 0.0
    %329 = vmatprep.subr.mxu0 0.0
    %330 = vmatpush1.msra.mxu0 0.0
    %331 = vmatprep.subr.mxu0 0.0
    %332 = vmatpush1.msra.mxu0 0.0
    %333 = vmatprep.subr.mxu0 0.0
    %334 = vmatpush1.msra.mxu0 0.0
    %335 = vmatprep.subr.mxu0 0.0
    %336 = vmatpush1.msra.mxu0 0.0
    %337 = vmatprep.subr.mxu0 0.0
    %338 = vmatpush1.msra.mxu0 0.0
    %339 = vmatprep.subr.mxu0 0.0
    %340 = vmatpush1.msra.mxu0 0.0
    %341 = vmatprep.subr.mxu0 0.0
    %342 = vmatpush1.msra.mxu0 0.0
    %343 = vmatprep.subr.mxu0 0.0
    %344 = vmatpush1.msra.mxu0 0.0
    %345 = vmatprep.subr.mxu0 0.0
    %346 = vmatpush1.msra.mxu0 0.0
    %347 = vmatprep.subr.mxu0 0.0
    %348 = vmatpush1.msra.mxu0 0.0
    %349 = vmatprep.subr.mxu0 0.0
    %350 = vmatpush1.msra.mxu0 0.0
    %351 = vmatprep.subr.mxu0 0.0
    %352 = vmatpush1.msra.mxu0 0.0
    %353 = vmatprep.subr.mxu0 0.0
    %354 = vmatpush1.msra.mxu0 0.0
    %355 = vmatprep.subr.mxu0 0.0
    %356 = vmatpush1.msra.mxu0 0.0
    %357 = vmatprep.subr.mxu0 0.0
    %358 = vmatpush1.msra.mxu0 0.0
    %359 = vmatprep.subr.mxu0 0.0
    %360 = vmatpush1.msra.mxu0 0.0
    %361 = vmatprep.subr.mxu0 0.0
    %362 = vmatpush1.msra.mxu0 0.0
    %363 = vmatprep.subr.mxu0 0.0
    %364 = vmatpush1.msra.mxu0 0.0
    %365 = vmatprep.subr.mxu0 0.0
    %366 = vmatpush1.msra.mxu0 0.0
    %367 = vmatprep.subr.mxu0 0.0
    %368 = vmatpush1.msra.mxu0 0.0
    %369 = vmatprep.subr.mxu0 0.0
    %370 = vmatpush1.msra.mxu0 0.0
    %371 = vmatprep.subr.mxu0 0.0
    %372 = vmatpush1.msra.mxu0 0.0
    %373 = vmatprep.subr.mxu0 0.0
    %374 = vmatpush1.msra.mxu0 0.0
    %375 = vmatprep.subr.mxu0 0.0
    %376 = vmatpush1.msra.mxu0 0.0
    %377 = vmatprep.subr.mxu0 0.0
    %378 = vmatpush1.msra.mxu0 0.0
    %379 = vmatprep.mubr.f32.mxu0 0.0
    %380 = vmatmul.mubr.f32.gmra.mrb[0].mxu0 %v313
    %v381 = vpop.f32.mrb[0].mxu0
    %v382 = vadd.f32 %v310, %v381
    %v383 = vpop.f32.mrb[0].mxu0
    %384 = vdwg.mxu0
    %v385 = vld [vmem:[%s5] sm:$0xff]
    %v386 = vld [vmem:[%s5 + $0x8] sm:$0xff]
    %v387 = vld [vmem:[%s5 + $0x10] sm:$0xff]
    %v388 = vld [vmem:[%s5 + $0x18] sm:$0xff]
    %v389 = vld [vmem:[%s5 + $0x20] sm:$0x1]
    %391 = vrot.lane.b32.xlu0 %v382, 64
    %v392 = vpop.permute.xlu0 %391
    %v393 = vsel %vm311, %v392, 0
    %395 = vmatprep.subr.mxu0 0.0
    %396 = vmatpush1.msra.mxu0 %v385
    %397 = vmatprep.subr.mxu0 0.0
    %398 = vmatpush1.msra.mxu0 %v386
    %399 = vmatprep.subr.mxu0 0.0
    %400 = vmatpush1.msra.mxu0 %v387
    %401 = vmatprep.subr.mxu0 0.0
    %402 = vmatpush1.msra.mxu0 %v388
    %403 = vmatprep.subr.mxu0 0.0
    %404 = vmatpush1.msra.mxu0 0.0
    %405 = vmatprep.subr.mxu0 0.0
    %406 = vmatpush1.msra.mxu0 0.0
    %407 = vmatprep.subr.mxu0 0.0
    %408 = vmatpush1.msra.mxu0 0.0
    %409 = vmatprep.subr.mxu0 0.0
    %410 = vmatpush1.msra.mxu0 0.0
    %411 = vmatprep.subr.mxu0 0.0
    %412 = vmatpush1.msra.mxu0 0.0
    %413 = vmatprep.subr.mxu0 0.0
    %414 = vmatpush1.msra.mxu0 0.0
    %415 = vmatprep.subr.mxu0 0.0
    %416 = vmatpush1.msra.mxu0 0.0
    %417 = vmatprep.subr.mxu0 0.0
    %418 = vmatpush1.msra.mxu0 0.0
    %419 = vmatprep.subr.mxu0 0.0
    %420 = vmatpush1.msra.mxu0 0.0
    %421 = vmatprep.subr.mxu0 0.0
    %422 = vmatpush1.msra.mxu0 0.0
    %423 = vmatprep.subr.mxu0 0.0
    %424 = vmatpush1.msra.mxu0 0.0
    %425 = vmatprep.subr.mxu0 0.0
    %426 = vmatpush1.msra.mxu0 0.0
    %427 = vmatprep.subr.mxu0 0.0
    %428 = vmatpush1.msra.mxu0 0.0
    %429 = vmatprep.subr.mxu0 0.0
    %430 = vmatpush1.msra.mxu0 0.0
    %431 = vmatprep.subr.mxu0 0.0
    %432 = vmatpush1.msra.mxu0 0.0
    %433 = vmatprep.subr.mxu0 0.0
    %434 = vmatpush1.msra.mxu0 0.0
    %435 = vmatprep.subr.mxu0 0.0
    %436 = vmatpush1.msra.mxu0 0.0
    %437 = vmatprep.subr.mxu0 0.0
    %438 = vmatpush1.msra.mxu0 0.0
    %439 = vmatprep.subr.mxu0 0.0
    %440 = vmatpush1.msra.mxu0 0.0
    %441 = vmatprep.subr.mxu0 0.0
    %442 = vmatpush1.msra.mxu0 0.0
    %443 = vmatprep.subr.mxu0 0.0
    %444 = vmatpush1.msra.mxu0 0.0
    %445 = vmatprep.subr.mxu0 0.0
    %446 = vmatpush1.msra.mxu0 0.0
    %447 = vmatprep.subr.mxu0 0.0
    %448 = vmatpush1.msra.mxu0 0.0
    %449 = vmatprep.subr.mxu0 0.0
    %450 = vmatpush1.msra.mxu0 0.0
    %451 = vmatprep.subr.mxu0 0.0
    %452 = vmatpush1.msra.mxu0 0.0
    %453 = vmatprep.subr.mxu0 0.0
    %454 = vmatpush1.msra.mxu0 0.0
    %455 = vmatprep.subr.mxu0 0.0
    %456 = vmatpush1.msra.mxu0 0.0
    %457 = vmatprep.subr.mxu0 0.0
    %458 = vmatpush1.msra.mxu0 0.0
    %459 = vmatprep.mubr.f32.mxu0 0.0
    %460 = vmatmul.mubr.f32.gmra.mrb[0].mxu0 %v393
    %v461 = vpop.f32.mrb[0].mxu0
    %v462 = vadd.f32 %v389, %v461
    %v463 = vpop.f32.mrb[0].mxu0
    %464 = vdwg.mxu0
    %v465 = vadd.f32 %v305, %v462
    %vm466 = vcmask 253952
    %v467 = vsel %vm466, %v465, 0.0
    %468 = vadd.xlane.f32.xlu0 %v467
    %v469 = vpop.xlane.xlu0 %468
    %v470 = vrcp.pop 32.0
    %v471 = vmul.f32 %v469, %v470
    %v472 = vsub.f32 %v465, %v471
    %v473 = vmul.f32 %v472, %v472
    %v474 = vsel %vm466, %v473, 0.0
    %475 = vadd.xlane.f32.xlu0 %v474
    %v476 = vpop.xlane.xlu0 %475
    %v477 = vmul.f32 %v476, %v470
    %v478 = vadd.f32 %v477, 1e-05
    %v479 = vrsqrt.pop %v478
    %v480 = vmul.f32 %v472, %v479
    %v481 = vld [vmem:[%s6] sm:$0x1]
    %v482 = vmul.f32 %v480, %v481
    %v483 = vld [vmem:[%s6 + $0x1] sm:$0x1]
    %v484 = vadd.f32 %v482, %v483
    %v485 = vld [vmem:[%s7] sm:$0xff]
    %v486 = vld [vmem:[%s7 + $0x8] sm:$0xff]
    %v487 = vld [vmem:[%s7 + $0x10] sm:$0xff]
    %v488 = vld [vmem:[%s7 + $0x18] sm:$0xff]
    %v489 = vld [vmem:[%s7 + $0x20] sm:$0x1]
    %v491 = vsel %vm311, %v484, 0
    %493 = vmatprep.subr.mxu0 0.0
    %494 = vmatpush1.msra.mxu0 %v485
    %495 = vmatprep.subr.mxu0 0.0
    %496 = vmatpush1.msra.mxu0 %v486
    %497 = vmatprep.subr.mxu0 0.0
    %498 = vmatpush1.msra.mxu0 %v487
    %499 = vmatprep.subr.mxu0 0.0
    %500 = vmatpush1.msra.mxu0 %v488
    %501 = vmatprep.subr.mxu0 0.0
    %502 = vmatpush1.msra.mxu0 0.0
    %503 = vmatprep.subr.mxu0 0.0
    %504 = vmatpush1.msra.mxu0 0.0
    %505 = vmatprep.subr.mxu0 0.0
    %506 = vmatpush1.msra.mxu0 0.0
    %507 = vmatprep.subr.mxu0 0.0
    %508 = vmatpush1.msra.mxu0 0.0
    %509 = vmatprep.subr.mxu0 0.0
    %510 = vmatpush1.msra.mxu0 0.0
    %511 = vmatprep.subr.mxu0 0.0
    %512 = vmatpush1.msra.mxu0 0.0
    %513 = vmatprep.subr.mxu0 0.0
    %514 = vmatpush1.msra.mxu0 0.0
    %515 = vmatprep.subr.mxu0 0.0
    %516 = vmatpush1.msra.mxu0 0.0
    %517 = vmatprep.subr.mxu0 0.0
    %518 = vmatpush1.msra.mxu0 0.0
    %519 = vmatprep.subr.mxu0 0.0
    %520 = vmatpush1.msra.mxu0 0.0
    %521 = vmatprep.subr.mxu0 0.0
    %522 = vmatpush1.msra.mxu0 0.0
    %523 = vmatprep.subr.mxu0 0.0
    %524 = vmatpush1.msra.mxu0 0.0
    %525 = vmatprep.subr.mxu0 0.0
    %526 = vmatpush1.msra.mxu0 0.0
    %527 = vmatprep.subr.mxu0 0.0
    %528 = vmatpush1.msra.mxu0 0.0
    %529 = vmatprep.subr.mxu0 0.0
    %530 = vmatpush1.msra.mxu0 0.0
    %531 = vmatprep.subr.mxu0 0.0
    %532 = vmatpush1.msra.mxu0 0.0
    %533 = vmatprep.subr.mxu0 0.0
    %534 = vmatpush1.msra.mxu0 0.0
    %535 = vmatprep.subr.mxu0 0.0
    %536 = vmatpush1.msra.mxu0 0.0
    %537 = vmatprep.subr.mxu0 0.0
    %538 = vmatpush1.msra.mxu0 0.0
    %539 = vmatprep.subr.mxu0 0.0
    %540 = vmatpush1.msra.mxu0 0.0
    %541 = vmatprep.subr.mxu0 0.0
    %542 = vmatpush1.msra.mxu0 0.0
    %543 = vmatprep.subr.mxu0 0.0
    %544 = vmatpush1.msra.mxu0 0.0
    %545 = vmatprep.subr.mxu0 0.0
    %546 = vmatpush1.msra.mxu0 0.0
    %547 = vmatprep.subr.mxu0 0.0
    %548 = vmatpush1.msra.mxu0 0.0
    %549 = vmatprep.subr.mxu0 0.0
    %550 = vmatpush1.msra.mxu0 0.0
    %551 = vmatprep.subr.mxu0 0.0
    %552 = vmatpush1.msra.mxu0 0.0
    %553 = vmatprep.subr.mxu0 0.0
    %554 = vmatpush1.msra.mxu0 0.0
    %555 = vmatprep.subr.mxu0 0.0
    %556 = vmatpush1.msra.mxu0 0.0
    %557 = vmatprep.mubr.f32.mxu0 0.0
    %558 = vmatmul.mubr.f32.gmra.mrb[0].mxu0 %v491
    %v559 = vpop.f32.mrb[0].mxu0
    %v560 = vadd.f32 %v489, %v559
    %v561 = vpop.f32.mrb[0].mxu0
    %562 = vdwg.mxu0
    %v563 = vmax.f32 %v560, 0.0
    %v564 = vld [vmem:[%s8] sm:$0xff]
    %v565 = vld [vmem:[%s8 + $0x8] sm:$0xff]
    %v566 = vld [vmem:[%s8 + $0x10] sm:$0xff]
    %v567 = vld [vmem:[%s8 + $0x18] sm:$0xff]
    %v568 = vld [vmem:[%s8 + $0x20] sm:$0xff]
    %v569 = vld [vmem:[%s8 + $0x28] sm:$0xff]
    %v570 = vld [vmem:[%s8 + $0x30] sm:$0xff]
    %v571 = vld [vmem:[%s8 + $0x38] sm:$0xff]
    %v572 = vld [vmem:[%s8 + $0x40] sm:$0x1]
    %vm573 = vcmask 523264
    %v575 = vsel %vm573, %v563, 0
    %577 = vmatprep.subr.mxu0 0.0
    %578 = vmatpush1.msra.mxu0 %v564
    %579 = vmatprep.subr.mxu0 0.0
    %580 = vmatpush1.msra.mxu0 %v565
    %581 = vmatprep.subr.mxu0 0.0
    %582 = vmatpush1.msra.mxu0 %v566
    %583 = vmatprep.subr.mxu0 0.0
    %584 = vmatpush1.msra.mxu0 %v567
    %585 = vmatprep.subr.mxu0 0.0
    %586 = vmatpush1.msra.mxu0 %v568
    %587 = vmatprep.subr.mxu0 0.0
    %588 = vmatpush1.msra.mxu0 %v569
    %589 = vmatprep.subr.mxu0 0.0
    %590 = vmatpush1.msra.mxu0 %v570
    %591 = vmatprep.subr.mxu0 0.0
    %592 = vmatpush1.msra.mxu0 %v571
    %593 = vmatprep.subr.mxu0 0.0
    %594 = vmatpush1.msra.mxu0 0.0
    %595 = vmatprep.subr.mxu0 0.0
    %596 = vmatpush1.msra.mxu0 0.0
    %597 = vmatprep.subr.mxu0 0.0
    %598 = vmatpush1.msra.mxu0 0.0
    %599 = vmatprep.subr.mxu0 0.0
    %600 = vmatpush1.msra.mxu0 0.0
    %601 = vmatprep.subr.mxu0 0.0
    %602 = vmatpush1.msra.mxu0 0.0
    %603 = vmatprep.subr.mxu0 0.0
    %604 = vmatpush1.msra.mxu0 0.0
    %605 = vmatprep.subr.mxu0 0.0
    %606 = vmatpush1.msra.mxu0 0.0
    %607 = vmatprep.subr.mxu0 0.0
    %608 = vmatpush1.msra.mxu0 0.0
    %609 = vmatprep.subr.mxu0 0.0
    %610 = vmatpush1.msra.mxu0 0.0
    %611 = vmatprep.subr.mxu0 0.0
    %612 = vmatpush1.msra.mxu0 0.0
    %613 = vmatprep.subr.mxu0 0.0
    %614 = vmatpush1.msra.mxu0 0.0
    %615 = vmatprep.subr.mxu0 0.0
    %616 = vmatpush1.msra.mxu0 0.0
    %617 = vmatprep.subr.mxu0 0.0
    %618 = vmatpush1.msra.mxu0 0.0
    %619 = vmatprep.subr.mxu0 0.0
    %620 = vmatpush1.msra.mxu0 0.0
    %621 = vmatprep.subr.mxu0 0.0
    %622 = vmatpush1.msra.mxu0 0.0
    %623 = vmatprep.subr.mxu0 0.0
    %624 = vmatpush1.msra.mxu0 0.0
    %625 = vmatprep.subr.mxu0 0.0
    %626 = vmatpush1.msra.mxu0 0.0
    %627 = vmatprep.subr.mxu0 0.0
    %628 = vmatpush1.msra.mxu0 0.0
    %629 = vmatprep.subr.mxu0 0.0
    %630 = vmatpush1.msra.mxu0 0.0
    %631 = vmatprep.subr.mxu0 0.0
    %632 = vmatpush1.msra.mxu0 0.0
    %633 = vmatprep.subr.mxu0 0.0
    %634 = vmatpush1.msra.mxu0 0.0
    %635 = vmatprep.subr.mxu0 0.0
    %636 = vmatpush1.msra.mxu0 0.0
    %637 = vmatprep.subr.mxu0 0.0
    %638 = vmatpush1.msra.mxu0 0.0
    %639 = vmatprep.subr.mxu0 0.0
    %640 = vmatpush1.msra.mxu0 0.0
    %641 = vmatprep.mubr.f32.mxu0 0.0
    %642 = vmatmul.mubr.f32.gmra.mrb[0].mxu0 %v575
    %v643 = vpop.f32.mrb[0].mxu0
    %v644 = vadd.f32 %v572, %v643
    %v645 = vpop.f32.mrb[0].mxu0
    %646 = vdwg.mxu0
    %v647 = vadd.f32 %v484, %v644
    %v648 = vsel %vm466, %v647, 0.0
    %649 = vadd.xlane.f32.xlu0 %v648
    %v650 = vpop.xlane.xlu0 %649
    %v651 = vmul.f32 %v650, %v470
    %v652 = vsub.f32 %v647, %v651
    %v653 = vmul.f32 %v652, %v652
    %v654 = vsel %vm466, %v653, 0.0
    %655 = vadd.xlane.f32.xlu0 %v654
    %v656 = vpop.xlane.xlu0 %655
    %v657 = vmul.f32 %v656, %v470
    %v658 = vadd.f32 %v657, 1e-05
    %v659 = vrsqrt.pop %v658
    %v660 = vmul.f32 %v652, %v659
    %v661 = vld [vmem:[%s6 + $0x2] sm:$0x1]
    %v662 = vmul.f32 %v660, %v661
    %v663 = vld [vmem:[%s6 + $0x3] sm:$0x1]
    %v664 = vadd.f32 %v662, %v663
    %v665 = vld [vmem:[%s9] sm:$0xff]
    %v666 = vld [vmem:[%s9 + $0x8] sm:$0xff]
    %v667 = vld [vmem:[%s9 + $0x10] sm:$0xff]
    %v668 = vld [vmem:[%s9 + $0x18] sm:$0xff]
    %v669 = vld [vmem:[%s9 + $0x20] sm:$0x1]
    %v671 = vsel %vm311, %v664, 0
    %673 = vmatprep.subr.mxu0 0.0
    %674 = vmatpush1.msra.mxu0 %v665
    %675 = vmatprep.subr.mxu0 0.0
    %676 = vmatpush1.msra.mxu0 %v666
    %677 = vmatprep.subr.mxu0 0.0
    %678 = vmatpush1.msra.mxu0 %v667
    %679 = vmatprep.subr.mxu0 0.0
    %680 = vmatpush1.msra.mxu0 %v668
    %681 = vmatprep.subr.mxu0 0.0
    %682 = vmatpush1.msra.mxu0 0.0
    %683 = vmatprep.subr.mxu0 0.0
    %684 = vmatpush1.msra.mxu0 0.0
    %685 = vmatprep.subr.mxu0 0.0
    %686 = vmatpush1.msra.mxu0 0.0
    %687 = vmatprep.subr.mxu0 0.0
    %688 = vmatpush1.msra.mxu0 0.0
    %689 = vmatprep.subr.mxu0 0.0
    %690 = vmatpush1.msra.mxu0 0.0
    %691 = vmatprep.subr.mxu0 0.0
    %692 = vmatpush1.msra.mxu0 0.0
    %693 = vmatprep.subr.mxu0 0.0
    %694 = vmatpush1.msra.mxu0 0.0
    %695 = vmatprep.subr.mxu0 0.0
    %696 = vmatpush1.msra.mxu0 0.0
    %697 = vmatprep.subr.mxu0 0.0
    %698 = vmatpush1.msra.mxu0 0.0
    %699 = vmatprep.subr.mxu0 0.0
    %700 = vmatpush1.msra.mxu0 0.0
    %701 = vmatprep.subr.mxu0 0.0
    %702 = vmatpush1.msra.mxu0 0.0
    %703 = vmatprep.subr.mxu0 0.0
    %704 = vmatpush1.msra.mxu0 0.0
    %705 = vmatprep.subr.mxu0 0.0
    %706 = vmatpush1.msra.mxu0 0.0
    %707 = vmatprep.subr.mxu0 0.0
    %708 = vmatpush1.msra.mxu0 0.0
    %709 = vmatprep.subr.mxu0 0.0
    %710 = vmatpush1.msra.mxu0 0.0
    %711 = vmatprep.subr.mxu0 0.0
    %712 = vmatpush1.msra.mxu0 0.0
    %713 = vmatprep.subr.mxu0 0.0
    %714 = vmatpush1.msra.mxu0 0.0
    %715 = vmatprep.subr.mxu0 0.0
    %716 = vmatpush1.msra.mxu0 0.0
    %717 = vmatprep.subr.mxu0 0.0
    %718 = vmatpush1.msra.mxu0 0.0
    %719 = vmatprep.subr.mxu0 0.0
    %720 = vmatpush1.msra.mxu0 0.0
    %721 = vmatprep.subr.mxu0 0.0
    %722 = vmatpush1.msra.mxu0 0.0
    %723 = vmatprep.subr.mxu0 0.0
    %724 = vmatpush1.msra.mxu0 0.0
    %725 = vmatprep.subr.mxu0 0.0
    %726 = vmatpush1.msra.mxu0 0.0
    %727 = vmatprep.subr.mxu0 0.0
    %728 = vmatpush1.msra.mxu0 0.0
    %729 = vmatprep.subr.mxu0 0.0
    %730 = vmatpush1.msra.mxu0 0.0
    %731 = vmatprep.subr.mxu0 0.0
    %732 = vmatpush1.msra.mxu0 0.0
    %733 = vmatprep.subr.mxu0 0.0
    %734 = vmatpush1.msra.mxu0 0.0
    %735 = vmatprep.subr.mxu0 0.0
    %736 = vmatpush1.msra.mxu0 0.0
    %737 = vmatprep.mubr.f32.mxu0 0.0
    %738 = vmatmul.mubr.f32.gmra.mrb[0].mxu0 %v671
    %v739 = vpop.f32.mrb[0].mxu0
    %v740 = vadd.f32 %v669, %v739
    %v741 = vpop.f32.mrb[0].mxu0
    %742 = vdwg.mxu0
    %743 = vst [vmem:[%s10] sm:$0x1] %v740
    %744 = vst.msk [vmem:[#allocation2] sm:$0x1] %vm466, %v305
    // Predicated region
    $region42: #{_fused_step_impl.1} parent=1 // pred_check
      _
    $region43: #{_fused_step_impl.1} parent=1 // pred_check_branch
      %746 = sbr.rel (0) target = $region45
    $region44: #{_fused_step_impl.1} parent=1 // pred_region
      _
    $region45: #{_fused_step_impl.1} parent=1 // pred_fallthru
      _
    // Predicated region
    $region46: #{_fused_step_impl.1} parent=1 // pred_check
      _
    $region47: #{_fused_step_impl.1} parent=1 // pred_check_branch
      %748 = sbr.rel (0) target = $region49
    $region48: #{_fused_step_impl.1} parent=1 // pred_region
      %s750 = ssub.s32 16, 16
      %751 = vsyncadd [#allocation3], %s750
      %s753 = sshll.u32 [#allocation2], 4
      %s754 = int_to_ptr.vmem [resolvable:$true] %s753
      %756 = dma.vmem_to_hbm [thread:$0]  %s754, 16, %s11, [#allocation3]
    $region49: #{_fused_step_impl.1} parent=1 // pred_fallthru
      _
    // Predicated region
    $region50: #{_fused_step_impl.1} parent=1 // pred_check
      _
    $region51: #{_fused_step_impl.1} parent=1 // pred_check_branch
      %758 = sbr.rel (0) target = $region53
    $region52: #{_fused_step_impl.1} parent=1 // pred_region
      _
    $region53: #{_fused_step_impl.1} parent=1 // pred_fallthru
      _
    // Predicated region
    $region54: #{_fused_step_impl.1} parent=1 // pred_check
      _
    $region55: #{_fused_step_impl.1} parent=1 // pred_check_branch
      %760 = sbr.rel (0) target = $region57
    $region56: #{_fused_step_impl.1} parent=1 // pred_region
      %761 = dma.done [#allocation3], 16
    $region57: #{_fused_step_impl.1} parent=1 // pred_fallthru
      _
    %762 = vsyncpa [#allocation3], 1

</llo_original>
